<compile_context>
chip_gen: v7x
topology: tpu7x:2x2x1
jax: 0.10.0
libtpu: 0.0.40
codegen_flags: <defaults>
</compile_context>

<pallas_src>
import functools

import jax
import jax.numpy as jnp
from jax.experimental import pallas as pl
from jax.experimental.pallas import tpu as pltpu


def _softmax_last(x):
    # Softmax over the last (head) dim, kept in fp32 (exp runs on the EUP).
    m = jnp.max(x, axis=-1, keepdims=True)
    e = jnp.exp(x - m)
    return e / jnp.sum(e, axis=-1, keepdims=True)


def _context_kernel(x_ref, w_kv_ref, b_kv_ref, ctx_ref, ksum_ref, *, n_head):
    """Pass 1: accumulate per-head context (d,d) and k_cumsum over T tiles."""
    @pl.when(pl.program_id(1) == 0)
    def _():
        ctx_ref[...] = jnp.zeros_like(ctx_ref)
        ksum_ref[...] = jnp.zeros_like(ksum_ref)

    x = x_ref[0].astype(jnp.bfloat16)                 # (t_tile, C) bf16 MXU operand
    _, C = x.shape
    d = C // n_head

    # Fused k/v projection: one (t_tile, C) x (C, 2C) MXU matmul, fp32 accumulate.
    kv = jnp.dot(x, w_kv_ref[...], preferred_element_type=jnp.float32)
    kv = kv + b_kv_ref[...]                           # fp32 bias add
    k = kv[:, :C]
    v = kv[:, C:]

    # Static (unrolled) head loop with static lane slices — no (T,H,d) relayout.
    for h in range(n_head):
        lo, hi = h * d, (h + 1) * d
        kh = _softmax_last(k[:, lo:hi])               # (t_tile, d) fp32
        vh = v[:, lo:hi]                              # (t_tile, d) fp32

        ksum_ref[0, h] += jnp.sum(kh, axis=0, keepdims=True)      # (1, d)
        # context += kh^T @ vh : contract axis 0 of both (no explicit transpose),
        # bf16 operands, fp32 accumulation straight into the output block.
        ctx_ref[0, h] += jax.lax.dot_general(
            kh.astype(jnp.bfloat16), vh.astype(jnp.bfloat16),
            dimension_numbers=(((0,), (0,)), ((), ())),
            preferred_element_type=jnp.float32)


def _output_kernel(x_ref, ctx_ref, ksum_ref, w_q_ref, b_q_ref, w_p_ref, b_p_ref,
                   o_ref, y_ref, *, n_head):
    """Pass 2: q projection, per-head linear attention, output projection."""
    x = x_ref[0].astype(jnp.bfloat16)                 # (t_tile, C)
    _, C = x.shape
    d = C // n_head

    q = jnp.dot(x, w_q_ref[...], preferred_element_type=jnp.float32)
    q = q + b_q_ref[...]                              # fp32

    for h in range(n_head):
        lo, hi = h * d, (h + 1) * d
        qh = _softmax_last(q[:, lo:hi])               # (t_tile, d) fp32
        # D_inv denominator (exact fp32 division below — parity with PyTorch).
        denom = jnp.sum(qh * ksum_ref[0, h], axis=-1, keepdims=True)   # (t_tile, 1)
        qc = jnp.dot(qh.astype(jnp.bfloat16),
                     ctx_ref[0, h].astype(jnp.bfloat16),
                     preferred_element_type=jnp.float32)               # (t_tile, d)
        # 'b h n d -> b n (h d)' is free: each head writes its lane range of the
        # bf16 scratch tile (no concatenate, no relayout).
        y_ref[:, lo:hi] = (qc / denom + qh).astype(y_ref.dtype)

    out = jnp.dot(y_ref[...], w_p_ref[...], preferred_element_type=jnp.float32)
    out = out + b_p_ref[...]
    o_ref[0] = out.astype(o_ref.dtype)


def _pick_tile(T):
    """Largest friendly T tile that divides T (fall back to full T)."""
    for t in (512, 256, 128, 64, 32, 16, 8):
        if T % t == 0:
            return t
    return T


def _vmem_limit_bytes(t_tile, C, n_head, in_bytes, out_bytes):
    """Scoped-VMEM budget from the (larger) pass-2 working set, HW-clamped."""
    f32, bf16 = 4, 2
    d = C // n_head
    weights = 2 * (C * C * bf16) * 2                  # w_q + w_p, double-buffered
    biases = 2 * (C * f32) * 2
    ctx = (n_head * d * d + n_head * d) * f32 * 2     # context + k_cumsum
    io = (t_tile * C) * (in_bytes + out_bytes) * 2    # x tile + out tile, double-buffered
    scratch = t_tile * C * bf16                       # y tile
    temps = t_tile * C * (bf16 + 3 * f32)             # x cast, q, per-head temps, fp32 out
    est = int((weights + biases + ctx + io + scratch + temps) * 1.5)
    try:
        cap = pltpu.get_tpu_info().vmem_capacity_bytes
    except Exception:                                  # info query only — never wraps a dispatch
        cap = 64 * 1024 * 1024
    return max(32 * 1024 * 1024, min(est, cap - 16 * 1024 * 1024))


def linear_attention(x, wq, bq, wk, bk, wv, bv, wp, bp, *, n_head):
    B, T, C = x.shape
    assert C % n_head == 0
    d = C // n_head

    # Host-side weight prep (in a real model do this once at parameter load):
    # nn.Linear computes x @ W.T + b, so pre-transpose; fuse k/v into a single
    # (C, 2C) weight; matmul operands in bf16 (MXU), biases stay fp32.
    wdt = jnp.bfloat16
    w_kv = jnp.concatenate([wk.T, wv.T], axis=1).astype(wdt)          # (C, 2C)
    b_kv = jnp.concatenate([bk, bv]).reshape(1, 2 * C).astype(jnp.float32)
    w_q = wq.T.astype(wdt)                                            # (C, C)
    b_q = bq.reshape(1, C).astype(jnp.float32)
    w_p = wp.T.astype(wdt)                                            # (C, C)
    b_p = bp.reshape(1, C).astype(jnp.float32)

    t_tile = _pick_tile(T)
    nt = T // t_tile
    itemsize = jnp.dtype(x.dtype).itemsize
    vmem_limit = _vmem_limit_bytes(t_tile, C, n_head, itemsize, itemsize)

    # ---------- Pass 1: per-head context + k_cumsum (reduction over T tiles).
    ctx_cost = pl.CostEstimate(
        flops=int(B * T * (4 * C * C + 2 * C * d)),
        transcendentals=int(B * T * C),
        bytes_accessed=int(B * T * C * itemsize + w_kv.size * 2
                           + B * n_head * d * (d + 1) * 4))
    ctx, ksum = pl.pallas_call(
        functools.partial(_context_kernel, n_head=n_head),
        out_shape=(jax.ShapeDtypeStruct((B, n_head, d, d), jnp.float32),
                   jax.ShapeDtypeStruct((B, n_head, 1, d), jnp.float32)),
        grid_spec=pltpu.PrefetchScalarGridSpec(
            num_scalar_prefetch=0,
            grid=(B, nt),
            in_specs=[
                pl.BlockSpec((1, t_tile, C), lambda b, t: (b, t, 0)),   # x tile
                pl.BlockSpec((C, 2 * C), lambda b, t: (0, 0)),          # w_kv (bf16)
                pl.BlockSpec((1, 2 * C), lambda b, t: (0, 0)),          # b_kv (f32)
            ],
            out_specs=[
                pl.BlockSpec((1, n_head, d, d), lambda b, t: (b, 0, 0, 0)),
                pl.BlockSpec((1, n_head, 1, d), lambda b, t: (b, 0, 0, 0)),
            ],
        ),
        compiler_params=pltpu.CompilerParams(
            dimension_semantics=("parallel", "arbitrary"),
            vmem_limit_bytes=vmem_limit),
        cost_estimate=ctx_cost,
    )(x, w_kv, b_kv)

    # ---------- Pass 2: q projection, y, output projection.  Single flat
    # "parallel" axis over (B * T tiles) keeps both v7x cores busy even for B=1.
    out_cost = pl.CostEstimate(
        flops=int(B * T * (4 * C * C + 2 * C * d)),
        transcendentals=int(B * T * C),
        bytes_accessed=int(2 * B * T * C * itemsize + (w_q.size + w_p.size) * 2
                           + B * n_head * d * (d + 1) * 4))
    out = pl.pallas_call(
        functools.partial(_output_kernel, n_head=n_head),
        out_shape=jax.ShapeDtypeStruct((B, T, C), x.dtype),
        grid_spec=pltpu.PrefetchScalarGridSpec(
            num_scalar_prefetch=0,
            grid=(B * nt,),
            in_specs=[
                pl.BlockSpec((1, t_tile, C), lambda i: (i // nt, i % nt, 0)),    # x tile
                pl.BlockSpec((1, n_head, d, d), lambda i: (i // nt, 0, 0, 0)),   # ctx
                pl.BlockSpec((1, n_head, 1, d), lambda i: (i // nt, 0, 0, 0)),   # k_cumsum
                pl.BlockSpec((C, C), lambda i: (0, 0)),                          # w_q (bf16)
                pl.BlockSpec((1, C), lambda i: (0, 0)),                          # b_q (f32)
                pl.BlockSpec((C, C), lambda i: (0, 0)),                          # w_p (bf16)
                pl.BlockSpec((1, C), lambda i: (0, 0)),                          # b_p (f32)
            ],
            out_specs=pl.BlockSpec((1, t_tile, C), lambda i: (i // nt, i % nt, 0)),
            scratch_shapes=[pltpu.VMEM((t_tile, C), jnp.bfloat16)],              # y tile
        ),
        compiler_params=pltpu.CompilerParams(
            dimension_semantics=("parallel",),
            vmem_limit_bytes=vmem_limit),
        cost_estimate=out_cost,
    )(x, ctx, ksum, w_q, b_q, w_p, b_p)
    return out


def linear_attention_ref(x, wq, bq, wk, bk, wv, bv, wp, bp, *, n_head):
    """Pure-JAX fp32 reference mirroring the PyTorch forward (attn_type='l1')."""
    B, T, C = x.shape
    d = C // n_head

    def proj(x_, w, b):  # nn.Linear
        return x_ @ w.T + b

    def split_heads(t):  # (B,T,C) -> (B,H,T,d)
        return t.reshape(B, T, n_head, d).transpose(0, 2, 1, 3)

    q = split_heads(proj(x, wq, bq))
    k = split_heads(proj(x, wk, bk))
    v = split_heads(proj(x, wv, bv))

    q = jax.nn.softmax(q, axis=-1)
    k = jax.nn.softmax(k, axis=-1)
    k_cumsum = k.sum(axis=-2, keepdims=True)
    d_inv = 1.0 / (q * k_cumsum).sum(axis=-1, keepdims=True)

    context = jnp.einsum('bhtd,bhte->bhde', k, v)
    y = jnp.einsum('bhtd,bhde->bhte', q, context) * d_inv + q
    y = y.transpose(0, 2, 1, 3).reshape(B, T, C)
    return proj(y, wp, bp)


if __name__ == "__main__":
    B, T, C, H = 2, 8, 32, 4

    key = jax.random.PRNGKey(0)
    keys = jax.random.split(key, 9)
    scale = 1.0 / jnp.sqrt(C)

    x = jax.random.normal(keys[0], (B, T, C), dtype=jnp.float32)
    wq = jax.random.normal(keys[1], (C, C), dtype=jnp.float32) * scale
    bq = jax.random.normal(keys[2], (C,), dtype=jnp.float32) * 0.1
    wk = jax.random.normal(keys[3], (C, C), dtype=jnp.float32) * scale
    bk = jax.random.normal(keys[4], (C,), dtype=jnp.float32) * 0.1
    wv = jax.random.normal(keys[5], (C, C), dtype=jnp.float32) * scale
    bv = jax.random.normal(keys[6], (C,), dtype=jnp.float32) * 0.1
    wp = jax.random.normal(keys[7], (C, C), dtype=jnp.float32) * scale
    bp = jax.random.normal(keys[8], (C,), dtype=jnp.float32) * 0.1

    out = linear_attention(x, wq, bq, wk, bk, wv, bv, wp, bp, n_head=H)
    out = jax.block_until_ready(out)

    ref = linear_attention_ref(x, wq, bq, wk, bk, wv, bv, wp, bp, n_head=H)
    assert out.shape == (B, T, C)
    # Tolerance covers bf16 MXU operands (fp32 accumulation, exact division for
    # D_inv); with fp32 matmul operands the kernel matches the reference ~1e-5.
    assert jnp.allclose(out, ref, atol=3e-2, rtol=3e-2), "mismatch vs reference"

    print("KERNEL_OK")
</pallas_src>

<mosaic_0001>
module attributes {stable_mosaic.version = 11 : i64} {
  func.func @_context_kernel(%arg0: i32, %arg1: i32, %arg2: memref<1x8x32xf32, #tpu.memory_space<vmem>>, %arg3: memref<32x64xbf16, #tpu.memory_space<vmem>>, %arg4: memref<1x64xf32, #tpu.memory_space<vmem>>, %arg5: memref<1x4x8x8xf32, #tpu.memory_space<vmem>>, %arg6: memref<1x4x1x8xf32, #tpu.memory_space<vmem>>) attributes {dimension_semantics = [#tpu.dimension_semantics<parallel>, #tpu.dimension_semantics<arbitrary>], iteration_bounds = array<i64: 2, 1>, scalar_prefetch = 0 : i64, scratch_operands = 0 : i64, tpu.core_type = #tpu.core_type<tc>, window_params = [{transform_indices = @transform_0, window_bounds = array<i64: 1, 8, 32>}, {pipeline_mode = #tpu.pipeline_mode<synchronous>, transform_indices = @transform_1, window_bounds = array<i64: 32, 64>}, {pipeline_mode = #tpu.pipeline_mode<synchronous>, transform_indices = @transform_2, window_bounds = array<i64: 1, 64>}, {transform_indices = @transform_3, window_bounds = array<i64: 1, 4, 8, 8>}, {transform_indices = @transform_4, window_bounds = array<i64: 1, 4, 1, 8>}]} {
    %c0_i32 = arith.constant 0 : i32
    %0 = arith.cmpi eq, %arg1, %c0_i32 : i32
    %1 = arith.extui %0 : i1 to i32
    %c0_i32_0 = arith.constant 0 : i32
    %2 = arith.cmpi ne, %1, %c0_i32_0 : i32
    scf.if %2 {
      %cst_84 = arith.constant 0.000000e+00 : f32
      %125 = vector.broadcast %cst_84 : f32 to vector<1x4x8x8xf32>
      %c0_85 = arith.constant 0 : index
      %c0_86 = arith.constant 0 : index
      %c0_87 = arith.constant 0 : index
      %c0_88 = arith.constant 0 : index
      %126 = vector.load %arg5[%c0_85, %c0_86, %c0_87, %c0_88] : memref<1x4x8x8xf32, #tpu.memory_space<vmem>>, vector<1x4x8x8xf32>
      tpu.vector_store %arg5[%c0_85, %c0_86, %c0_87, %c0_88], %125 {strides = array<i32>} : memref<1x4x8x8xf32, #tpu.memory_space<vmem>>, vector<1x4x8x8xf32>,
      %cst_89 = arith.constant 0.000000e+00 : f32
      %127 = vector.broadcast %cst_89 : f32 to vector<1x4x1x8xf32>
      %c0_90 = arith.constant 0 : index
      %c0_91 = arith.constant 0 : index
      %c0_92 = arith.constant 0 : index
      %c0_93 = arith.constant 0 : index
      %128 = vector.load %arg6[%c0_90, %c0_91, %c0_92, %c0_93] : memref<1x4x1x8xf32, #tpu.memory_space<vmem>>, vector<1x4x1x8xf32>
      tpu.vector_store %arg6[%c0_90, %c0_91, %c0_92, %c0_93], %127 {strides = array<i32>} : memref<1x4x1x8xf32, #tpu.memory_space<vmem>>, vector<1x4x1x8xf32>,
    } else {
    }
    %c0 = arith.constant 0 : index
    %c0_1 = arith.constant 0 : index
    %c0_2 = arith.constant 0 : index
    %3 = vector.load %arg2[%c0, %c0_1, %c0_2] : memref<1x8x32xf32, #tpu.memory_space<vmem>>, vector<1x8x32xf32>
    %4 = vector.shape_cast %3 : vector<1x8x32xf32> to vector<8x32xf32>
    %5 = arith.truncf %4 : vector<8x32xf32> to vector<8x32xbf16>
    %c0_3 = arith.constant 0 : index
    %c0_4 = arith.constant 0 : index
    %6 = vector.load %arg3[%c0_3, %c0_4] : memref<32x64xbf16, #tpu.memory_space<vmem>>, vector<32x64xbf16>
    %cst = arith.constant dense<0.000000e+00> : vector<8x64xf32>
    %7 = tpu.matmul %5, %6, %cst {dimension_numbers = #tpu.dot_dimension_numbers<[1], [0], [0], [1], [0, 0, 1, 1], [], []>} : vector<8x32xbf16>, vector<32x64xbf16>, vector<8x64xf32> -> vector<8x64xf32>
    %c0_5 = arith.constant 0 : index
    %c0_6 = arith.constant 0 : index
    %8 = vector.load %arg4[%c0_5, %c0_6] : memref<1x64xf32, #tpu.memory_space<vmem>>, vector<1x64xf32>
    %9 = vector.broadcast %8 : vector<1x64xf32> to vector<8x64xf32>
    %10 = arith.addf %7, %9 : vector<8x64xf32>
    %11 = vector.extract_strided_slice %10 {offsets = [0, 0], sizes = [8, 32], strides = [1, 1]} : vector<8x64xf32> to vector<8x32xf32>
    %12 = vector.extract_strided_slice %10 {offsets = [0, 32], sizes = [8, 32], strides = [1, 1]} : vector<8x64xf32> to vector<8x32xf32>
    %13 = vector.extract_strided_slice %11 {offsets = [0, 0], sizes = [8, 8], strides = [1, 1]} : vector<8x32xf32> to vector<8x8xf32>
    %cst_7 = arith.constant dense<0xFF800000> : vector<8xf32>
    %14 = vector.multi_reduction <maximumf>, %13, %cst_7 [1] : vector<8x8xf32> to vector<8xf32>
    %15 = vector.shape_cast %14 : vector<8xf32> to vector<8x1xf32>
    %16 = vector.broadcast %15 : vector<8x1xf32> to vector<8x8xf32>
    %17 = arith.subf %13, %16 : vector<8x8xf32>
    %18 = math.exp %17 : vector<8x8xf32>
    %cst_8 = arith.constant dense<0.000000e+00> : vector<8xf32>
    %19 = vector.multi_reduction <add>, %18, %cst_8 [1] : vector<8x8xf32> to vector<8xf32>
    %20 = vector.shape_cast %19 : vector<8xf32> to vector<8x1xf32>
    %21 = vector.broadcast %20 : vector<8x1xf32> to vector<8x8xf32>
    %22 = arith.divf %18, %21 : vector<8x8xf32>
    %23 = vector.extract_strided_slice %12 {offsets = [0, 0], sizes = [8, 8], strides = [1, 1]} : vector<8x32xf32> to vector<8x8xf32>
    %c0_9 = arith.constant 0 : index
    %c0_10 = arith.constant 0 : index
    %c0_11 = arith.constant 0 : index
    %c0_12 = arith.constant 0 : index
    %24 = vector.load %arg6[%c0_9, %c0_10, %c0_11, %c0_12] : memref<1x4x1x8xf32, #tpu.memory_space<vmem>>, vector<1x1x1x8xf32>
    %25 = vector.shape_cast %24 : vector<1x1x1x8xf32> to vector<1x8xf32>
    %cst_13 = arith.constant dense<0.000000e+00> : vector<8xf32>
    %26 = vector.multi_reduction <add>, %22, %cst_13 [0] : vector<8x8xf32> to vector<8xf32>
    %27 = vector.shape_cast %26 : vector<8xf32> to vector<1x8xf32>
    %28 = arith.addf %25, %27 : vector<1x8xf32>
    %c0_14 = arith.constant 0 : index
    %c0_15 = arith.constant 0 : index
    %c0_16 = arith.constant 0 : index
    %c0_17 = arith.constant 0 : index
    %29 = vector.load %arg6[%c0_14, %c0_15, %c0_16, %c0_17] : memref<1x4x1x8xf32, #tpu.memory_space<vmem>>, vector<1x1x1x8xf32>
    %30 = vector.shape_cast %29 : vector<1x1x1x8xf32> to vector<1x8xf32>
    %31 = vector.shape_cast %28 : vector<1x8xf32> to vector<1x1x1x8xf32>
    tpu.vector_store %arg6[%c0_14, %c0_15, %c0_16, %c0_17], %31 {strides = array<i32>} : memref<1x4x1x8xf32, #tpu.memory_space<vmem>>, vector<1x1x1x8xf32>,
    %c0_18 = arith.constant 0 : index
    %c0_19 = arith.constant 0 : index
    %c0_20 = arith.constant 0 : index
    %c0_21 = arith.constant 0 : index
    %32 = vector.load %arg5[%c0_18, %c0_19, %c0_20, %c0_21] : memref<1x4x8x8xf32, #tpu.memory_space<vmem>>, vector<1x1x8x8xf32>
    %33 = vector.shape_cast %32 : vector<1x1x8x8xf32> to vector<8x8xf32>
    %34 = arith.truncf %22 : vector<8x8xf32> to vector<8x8xbf16>
    %35 = arith.truncf %23 : vector<8x8xf32> to vector<8x8xbf16>
    %cst_22 = arith.constant dense<0.000000e+00> : vector<8x8xf32>
    %36 = tpu.matmul %34, %35, %cst_22 {dimension_numbers = #tpu.dot_dimension_numbers<[0], [0], [1], [1], [0, 1, 1, 1], [], []>} : vector<8x8xbf16>, vector<8x8xbf16>, vector<8x8xf32> -> vector<8x8xf32>
    %37 = arith.addf %33, %36 : vector<8x8xf32>
    %c0_23 = arith.constant 0 : index
    %c0_24 = arith.constant 0 : index
    %c0_25 = arith.constant 0 : index
    %c0_26 = arith.constant 0 : index
    %38 = vector.load %arg5[%c0_23, %c0_24, %c0_25, %c0_26] : memref<1x4x8x8xf32, #tpu.memory_space<vmem>>, vector<1x1x8x8xf32>
    %39 = vector.shape_cast %38 : vector<1x1x8x8xf32> to vector<8x8xf32>
    %40 = vector.shape_cast %37 : vector<8x8xf32> to vector<1x1x8x8xf32>
    tpu.vector_store %arg5[%c0_23, %c0_24, %c0_25, %c0_26], %40 {strides = array<i32>} : memref<1x4x8x8xf32, #tpu.memory_space<vmem>>, vector<1x1x8x8xf32>,
    %41 = vector.extract_strided_slice %11 {offsets = [0, 8], sizes = [8, 8], strides = [1, 1]} : vector<8x32xf32> to vector<8x8xf32>
    %cst_27 = arith.constant dense<0xFF800000> : vector<8xf32>
    %42 = vector.multi_reduction <maximumf>, %41, %cst_27 [1] : vector<8x8xf32> to vector<8xf32>
    %43 = vector.shape_cast %42 : vector<8xf32> to vector<8x1xf32>
    %44 = vector.broadcast %43 : vector<8x1xf32> to vector<8x8xf32>
    %45 = arith.subf %41, %44 : vector<8x8xf32>
    %46 = math.exp %45 : vector<8x8xf32>
    %cst_28 = arith.constant dense<0.000000e+00> : vector<8xf32>
    %47 = vector.multi_reduction <add>, %46, %cst_28 [1] : vector<8x8xf32> to vector<8xf32>
    %48 = vector.shape_cast %47 : vector<8xf32> to vector<8x1xf32>
    %49 = vector.broadcast %48 : vector<8x1xf32> to vector<8x8xf32>
    %50 = arith.divf %46, %49 : vector<8x8xf32>
    %51 = vector.extract_strided_slice %12 {offsets = [0, 8], sizes = [8, 8], strides = [1, 1]} : vector<8x32xf32> to vector<8x8xf32>
    %c0_29 = arith.constant 0 : index
    %c1 = arith.constant 1 : index
    %c0_30 = arith.constant 0 : index
    %c0_31 = arith.constant 0 : index
    %52 = vector.load %arg6[%c0_29, %c1, %c0_30, %c0_31] : memref<1x4x1x8xf32, #tpu.memory_space<vmem>>, vector<1x1x1x8xf32>
    %53 = vector.shape_cast %52 : vector<1x1x1x8xf32> to vector<1x8xf32>
    %cst_32 = arith.constant dense<0.000000e+00> : vector<8xf32>
    %54 = vector.multi_reduction <add>, %50, %cst_32 [0] : vector<8x8xf32> to vector<8xf32>
    %55 = vector.shape_cast %54 : vector<8xf32> to vector<1x8xf32>
    %56 = arith.addf %53, %55 : vector<1x8xf32>
    %c0_33 = arith.constant 0 : index
    %c1_34 = arith.constant 1 : index
    %c0_35 = arith.constant 0 : index
    %c0_36 = arith.constant 0 : index
    %57 = vector.load %arg6[%c0_33, %c1_34, %c0_35, %c0_36] : memref<1x4x1x8xf32, #tpu.memory_space<vmem>>, vector<1x1x1x8xf32>
    %58 = vector.shape_cast %57 : vector<1x1x1x8xf32> to vector<1x8xf32>
    %59 = vector.shape_cast %56 : vector<1x8xf32> to vector<1x1x1x8xf32>
    tpu.vector_store %arg6[%c0_33, %c1_34, %c0_35, %c0_36], %59 {strides = array<i32>} : memref<1x4x1x8xf32, #tpu.memory_space<vmem>>, vector<1x1x1x8xf32>,
    %c0_37 = arith.constant 0 : index
    %c1_38 = arith.constant 1 : index
    %c0_39 = arith.constant 0 : index
    %c0_40 = arith.constant 0 : index
    %60 = vector.load %arg5[%c0_37, %c1_38, %c0_39, %c0_40] : memref<1x4x8x8xf32, #tpu.memory_space<vmem>>, vector<1x1x8x8xf32>
    %61 = vector.shape_cast %60 : vector<1x1x8x8xf32> to vector<8x8xf32>
    %62 = arith.truncf %50 : vector<8x8xf32> to vector<8x8xbf16>
    %63 = arith.truncf %51 : vector<8x8xf32> to vector<8x8xbf16>
    %cst_41 = arith.constant dense<0.000000e+00> : vector<8x8xf32>
    %64 = tpu.matmul %62, %63, %cst_41 {dimension_numbers = #tpu.dot_dimension_numbers<[0], [0], [1], [1], [0, 1, 1, 1], [], []>} : vector<8x8xbf16>, vector<8x8xbf16>, vector<8x8xf32> -> vector<8x8xf32>
    %65 = arith.addf %61, %64 : vector<8x8xf32>
    %c0_42 = arith.constant 0 : index
    %c1_43 = arith.constant 1 : index
    %c0_44 = arith.constant 0 : index
    %c0_45 = arith.constant 0 : index
    %66 = vector.load %arg5[%c0_42, %c1_43, %c0_44, %c0_45] : memref<1x4x8x8xf32, #tpu.memory_space<vmem>>, vector<1x1x8x8xf32>
    %67 = vector.shape_cast %66 : vector<1x1x8x8xf32> to vector<8x8xf32>
    %68 = vector.shape_cast %65 : vector<8x8xf32> to vector<1x1x8x8xf32>
    tpu.vector_store %arg5[%c0_42, %c1_43, %c0_44, %c0_45], %68 {strides = array<i32>} : memref<1x4x8x8xf32, #tpu.memory_space<vmem>>, vector<1x1x8x8xf32>,
    %69 = vector.extract_strided_slice %11 {offsets = [0, 16], sizes = [8, 8], strides = [1, 1]} : vector<8x32xf32> to vector<8x8xf32>
    %cst_46 = arith.constant dense<0xFF800000> : vector<8xf32>
    %70 = vector.multi_reduction <maximumf>, %69, %cst_46 [1] : vector<8x8xf32> to vector<8xf32>
    %71 = vector.shape_cast %70 : vector<8xf32> to vector<8x1xf32>
    %72 = vector.broadcast %71 : vector<8x1xf32> to vector<8x8xf32>
    %73 = arith.subf %69, %72 : vector<8x8xf32>
    %74 = math.exp %73 : vector<8x8xf32>
    %cst_47 = arith.constant dense<0.000000e+00> : vector<8xf32>
    %75 = vector.multi_reduction <add>, %74, %cst_47 [1] : vector<8x8xf32> to vector<8xf32>
    %76 = vector.shape_cast %75 : vector<8xf32> to vector<8x1xf32>
    %77 = vector.broadcast %76 : vector<8x1xf32> to vector<8x8xf32>
    %78 = arith.divf %74, %77 : vector<8x8xf32>
    %79 = vector.extract_strided_slice %12 {offsets = [0, 16], sizes = [8, 8], strides = [1, 1]} : vector<8x32xf32> to vector<8x8xf32>
    %c0_48 = arith.constant 0 : index
    %c2 = arith.constant 2 : index
    %c0_49 = arith.constant 0 : index
    %c0_50 = arith.constant 0 : index
    %80 = vector.load %arg6[%c0_48, %c2, %c0_49, %c0_50] : memref<1x4x1x8xf32, #tpu.memory_space<vmem>>, vector<1x1x1x8xf32>
    %81 = vector.shape_cast %80 : vector<1x1x1x8xf32> to vector<1x8xf32>
    %cst_51 = arith.constant dense<0.000000e+00> : vector<8xf32>
    %82 = vector.multi_reduction <add>, %78, %cst_51 [0] : vector<8x8xf32> to vector<8xf32>
    %83 = vector.shape_cast %82 : vector<8xf32> to vector<1x8xf32>
    %84 = arith.addf %81, %83 : vector<1x8xf32>
    %c0_52 = arith.constant 0 : index
    %c2_53 = arith.constant 2 : index
    %c0_54 = arith.constant 0 : index
    %c0_55 = arith.constant 0 : index
    %85 = vector.load %arg6[%c0_52, %c2_53, %c0_54, %c0_55] : memref<1x4x1x8xf32, #tpu.memory_space<vmem>>, vector<1x1x1x8xf32>
    %86 = vector.shape_cast %85 : vector<1x1x1x8xf32> to vector<1x8xf32>
    %87 = vector.shape_cast %84 : vector<1x8xf32> to vector<1x1x1x8xf32>
    tpu.vector_store %arg6[%c0_52, %c2_53, %c0_54, %c0_55], %87 {strides = array<i32>} : memref<1x4x1x8xf32, #tpu.memory_space<vmem>>, vector<1x1x1x8xf32>,
    %c0_56 = arith.constant 0 : index
    %c2_57 = arith.constant 2 : index
    %c0_58 = arith.constant 0 : index
    %c0_59 = arith.constant 0 : index
    %88 = vector.load %arg5[%c0_56, %c2_57, %c0_58, %c0_59] : memref<1x4x8x8xf32, #tpu.memory_space<vmem>>, vector<1x1x8x8xf32>
    %89 = vector.shape_cast %88 : vector<1x1x8x8xf32> to vector<8x8xf32>
    %90 = arith.truncf %78 : vector<8x8xf32> to vector<8x8xbf16>
    %91 = arith.truncf %79 : vector<8x8xf32> to vector<8x8xbf16>
    %cst_60 = arith.constant dense<0.000000e+00> : vector<8x8xf32>
    %92 = tpu.matmul %90, %91, %cst_60 {dimension_numbers = #tpu.dot_dimension_numbers<[0], [0], [1], [1], [0, 1, 1, 1], [], []>} : vector<8x8xbf16>, vector<8x8xbf16>, vector<8x8xf32> -> vector<8x8xf32>
    %93 = arith.addf %89, %92 : vector<8x8xf32>
    %c0_61 = arith.constant 0 : index
    %c2_62 = arith.constant 2 : index
    %c0_63 = arith.constant 0 : index
    %c0_64 = arith.constant 0 : index
    %94 = vector.load %arg5[%c0_61, %c2_62, %c0_63, %c0_64] : memref<1x4x8x8xf32, #tpu.memory_space<vmem>>, vector<1x1x8x8xf32>
    %95 = vector.shape_cast %94 : vector<1x1x8x8xf32> to vector<8x8xf32>
    %96 = vector.shape_cast %93 : vector<8x8xf32> to vector<1x1x8x8xf32>
    tpu.vector_store %arg5[%c0_61, %c2_62, %c0_63, %c0_64], %96 {strides = array<i32>} : memref<1x4x8x8xf32, #tpu.memory_space<vmem>>, vector<1x1x8x8xf32>,
    %97 = vector.extract_strided_slice %11 {offsets = [0, 24], sizes = [8, 8], strides = [1, 1]} : vector<8x32xf32> to vector<8x8xf32>
    %cst_65 = arith.constant dense<0xFF800000> : vector<8xf32>
    %98 = vector.multi_reduction <maximumf>, %97, %cst_65 [1] : vector<8x8xf32> to vector<8xf32>
    %99 = vector.shape_cast %98 : vector<8xf32> to vector<8x1xf32>
    %100 = vector.broadcast %99 : vector<8x1xf32> to vector<8x8xf32>
    %101 = arith.subf %97, %100 : vector<8x8xf32>
    %102 = math.exp %101 : vector<8x8xf32>
    %cst_66 = arith.constant dense<0.000000e+00> : vector<8xf32>
    %103 = vector.multi_reduction <add>, %102, %cst_66 [1] : vector<8x8xf32> to vector<8xf32>
    %104 = vector.shape_cast %103 : vector<8xf32> to vector<8x1xf32>
    %105 = vector.broadcast %104 : vector<8x1xf32> to vector<8x8xf32>
    %106 = arith.divf %102, %105 : vector<8x8xf32>
    %107 = vector.extract_strided_slice %12 {offsets = [0, 24], sizes = [8, 8], strides = [1, 1]} : vector<8x32xf32> to vector<8x8xf32>
    %c0_67 = arith.constant 0 : index
    %c3 = arith.constant 3 : index
    %c0_68 = arith.constant 0 : index
    %c0_69 = arith.constant 0 : index
    %108 = vector.load %arg6[%c0_67, %c3, %c0_68, %c0_69] : memref<1x4x1x8xf32, #tpu.memory_space<vmem>>, vector<1x1x1x8xf32>
    %109 = vector.shape_cast %108 : vector<1x1x1x8xf32> to vector<1x8xf32>
    %cst_70 = arith.constant dense<0.000000e+00> : vector<8xf32>
    %110 = vector.multi_reduction <add>, %106, %cst_70 [0] : vector<8x8xf32> to vector<8xf32>
    %111 = vector.shape_cast %110 : vector<8xf32> to vector<1x8xf32>
    %112 = arith.addf %109, %111 : vector<1x8xf32>
    %c0_71 = arith.constant 0 : index
    %c3_72 = arith.constant 3 : index
    %c0_73 = arith.constant 0 : index
    %c0_74 = arith.constant 0 : index
    %113 = vector.load %arg6[%c0_71, %c3_72, %c0_73, %c0_74] : memref<1x4x1x8xf32, #tpu.memory_space<vmem>>, vector<1x1x1x8xf32>
    %114 = vector.shape_cast %113 : vector<1x1x1x8xf32> to vector<1x8xf32>
    %115 = vector.shape_cast %112 : vector<1x8xf32> to vector<1x1x1x8xf32>
    tpu.vector_store %arg6[%c0_71, %c3_72, %c0_73, %c0_74], %115 {strides = array<i32>} : memref<1x4x1x8xf32, #tpu.memory_space<vmem>>, vector<1x1x1x8xf32>,
    %c0_75 = arith.constant 0 : index
    %c3_76 = arith.constant 3 : index
    %c0_77 = arith.constant 0 : index
    %c0_78 = arith.constant 0 : index
    %116 = vector.load %arg5[%c0_75, %c3_76, %c0_77, %c0_78] : memref<1x4x8x8xf32, #tpu.memory_space<vmem>>, vector<1x1x8x8xf32>
    %117 = vector.shape_cast %116 : vector<1x1x8x8xf32> to vector<8x8xf32>
    %118 = arith.truncf %106 : vector<8x8xf32> to vector<8x8xbf16>
    %119 = arith.truncf %107 : vector<8x8xf32> to vector<8x8xbf16>
    %cst_79 = arith.constant dense<0.000000e+00> : vector<8x8xf32>
    %120 = tpu.matmul %118, %119, %cst_79 {dimension_numbers = #tpu.dot_dimension_numbers<[0], [0], [1], [1], [0, 1, 1, 1], [], []>} : vector<8x8xbf16>, vector<8x8xbf16>, vector<8x8xf32> -> vector<8x8xf32>
    %121 = arith.addf %117, %120 : vector<8x8xf32>
    %c0_80 = arith.constant 0 : index
    %c3_81 = arith.constant 3 : index
    %c0_82 = arith.constant 0 : index
    %c0_83 = arith.constant 0 : index
    %122 = vector.load %arg5[%c0_80, %c3_81, %c0_82, %c0_83] : memref<1x4x8x8xf32, #tpu.memory_space<vmem>>, vector<1x1x8x8xf32>
    %123 = vector.shape_cast %122 : vector<1x1x8x8xf32> to vector<8x8xf32>
    %124 = vector.shape_cast %121 : vector<8x8xf32> to vector<1x1x8x8xf32>
    tpu.vector_store %arg5[%c0_80, %c3_81, %c0_82, %c0_83], %124 {strides = array<i32>} : memref<1x4x8x8xf32, #tpu.memory_space<vmem>>, vector<1x1x8x8xf32>,
    return
  }
  func.func @transform_0(%arg0: i32, %arg1: i32) -> (i32, i32, i32) {
    %c0_i32 = arith.constant 0 : i32
    %c0_i32_0 = arith.constant 0 : i32
    return %arg0, %arg1, %c0_i32 : i32, i32, i32
  }
  func.func @transform_1(%arg0: i32, %arg1: i32) -> (i32, i32) {
    %c0_i32 = arith.constant 0 : i32
    %c0_i32_0 = arith.constant 0 : i32
    %c0_i32_1 = arith.constant 0 : i32
    return %c0_i32, %c0_i32_0 : i32, i32
  }
  func.func @transform_2(%arg0: i32, %arg1: i32) -> (i32, i32) {
    %c0_i32 = arith.constant 0 : i32
    %c0_i32_0 = arith.constant 0 : i32
    %c0_i32_1 = arith.constant 0 : i32
    return %c0_i32, %c0_i32_0 : i32, i32
  }
  func.func @transform_3(%arg0: i32, %arg1: i32) -> (i32, i32, i32, i32) {
    %c0_i32 = arith.constant 0 : i32
    %c0_i32_0 = arith.constant 0 : i32
    %c0_i32_1 = arith.constant 0 : i32
    %c0_i32_2 = arith.constant 0 : i32
    return %arg0, %c0_i32, %c0_i32_0, %c0_i32_1 : i32, i32, i32, i32
  }
  func.func @transform_4(%arg0: i32, %arg1: i32) -> (i32, i32, i32, i32) {
    %c0_i32 = arith.constant 0 : i32
    %c0_i32_0 = arith.constant 0 : i32
    %c0_i32_1 = arith.constant 0 : i32
    %c0_i32_2 = arith.constant 0 : i32
    return %arg0, %c0_i32, %c0_i32_0, %c0_i32_1 : i32, i32, i32, i32
  }
}

</mosaic_0001>

<llo_original>
// kernel: tpu_custom_call.1
$region0: #{tpu_custom_call.1}
  #allocation0 [shape = 'u32[]', space=smem, size = 0x4, offset = 0x4, fixed_abs, tag = 'smem constant byte address 0x4 - core index']
  #allocation1 [shape = 'u32[144,128]{1,0:T(1,128)}', space=vmem, size = 0x12000, scoped, tag = 'internal scratch']
  %s0 = inlined_call_operand.hbm [shape: f32[2,8,32], index: 0, kind: input, shape index: {}]
  %s1 = inlined_call_operand.hbm [shape: bf16[32,64], index: 1, kind: input, shape index: {}]
  %s2 = inlined_call_operand.vmem [shape: f32[1,64], index: 2, kind: input, shape index: {}]
  %s3 = inlined_call_operand.hbm [shape: f32[2,4,8,8], index: 3, kind: output, shape index: {0}]
  %s4 = inlined_call_operand.hbm [shape: f32[2,4,1,8], index: 4, kind: output, shape index: {1}]
  %5 = xla_tuple %s3, %s4
  %s6 = sld [smem:[#allocation0]]
  $region65: #{tpu_custom_call.1} parent=0
    _
  %s8 = ssub.s32 1, %s6
  %s9 = scalar_select 0, %s8, %s6
  $region1: #{tpu_custom_call.1} parent=0
    #allocation2 [shape = 'u8[8192]{0}', space=vmem, size = 0x2000, scoped, tag = 'input window, operand 0']
    #allocation3 [shape = 's32[2]{0}', space=sflag, size = 0x8, scoped, tag = 'scoped memory for tpu_custom_call.1']
    #allocation4 [shape = 's32[2]{0}', space=sflag, size = 0x8, scoped, tag = 'scoped memory for tpu_custom_call.1']
    #allocation5 [shape = 'u8[8192]{0}', space=vmem, size = 0x2000, scoped, tag = 'input window, operand 1, single buffered']
    #allocation6 [shape = 's32[1]{0}', space=sflag, size = 0x4, scoped, tag = 'scoped memory for tpu_custom_call.1']
    #allocation7 [shape = 'u8[32768]{0}', space=vmem, size = 0x8000, scoped, tag = 'output window, operand 0']
    #allocation8 [shape = 'u8[4096]{0}', space=vmem, size = 0x1000, scoped, tag = 'output window, operand 1']
    #allocation9 [shape = 's32[2]{0}', space=sflag, size = 0x8, scoped, tag = 'scoped memory for tpu_custom_call.1']
    %10 = vsyncpa [#allocation3], 0
    %s11 = scalar_lea.sflag [#allocation3], 1
    %12 = vsyncpa %s11, 0
    %13 = vsyncpa [#allocation6], 0
    %14 = vsyncpa [#allocation4], 0
    %s15 = scalar_lea.sflag [#allocation4], 1
    %16 = vsyncpa %s15, 0
    %17 = vsyncpa [#allocation9], 0
    %s18 = scalar_lea.sflag [#allocation9], 1
    %19 = vsyncpa %s18, 0
    loop: start=0, step=1, limit=4
    $region2: #{tpu_custom_call.1} parent=1 // loop_pre_header
      _
    $region3: #{tpu_custom_call.1} parent=1 // loop_header
      %s21 = sphi 0, %s25
      %p22 = scmp.ge.s32.totalorder %s21, 4
      %s28 = sphi 0, %s40
      %s29 = sphi 0, %s36
      %s30 = sphi 0, %s28
      %s31 = sphi 0, %s29
      %s32 = sphi 0, %s30
      %s33 = sphi 0, %s31
      %s45 = sphi 0, %s47
      %s48 = sphi 0, %s45
      %s49 = sphi 0, %s48
      %s65 = sphi 0, %s49
      %s69 = sphi 0, %s69
      %s71 = sphi 0, %s69
      %s72 = sphi 0, %s71
      %s86 = sphi 0, %s72
      %s90 = sphi 0, %s90
      %s92 = sphi 0, %s90
      %s93 = sphi 0, %s92
      %s107 = sphi 0, %s93
      %s113 = sphi 0, %s115
      %s116 = sphi 0, %s113
      %s117 = sphi 0, %s116
      %s133 = sphi 0, %s117
      %s139 = sphi 0, %s141
      %s142 = sphi 0, %s139
      %s143 = sphi 0, %s142
      %s159 = sphi 0, %s143
    $region4: #{tpu_custom_call.1} parent=1 // loop_header_branch
      %24 = sbr.rel (%p22) target = $region8
    $region5: #{tpu_custom_call.1} parent=1 // loop_body
      %s26 = ssub.s32 %s21, 1
      %s27 = ssub.s32 %s21, 2
      %s34 = sadd.s32 1, %s29
      %p35 = scmp.ge.s32.totalorder %s34, 1
      %s36 = scalar_select %p35, 0, %s34
      %s37 = sadd.s32 1, %s28
      %s38 = scalar_select %p35, %s37, %s28
      %p39 = scmp.ge.s32.totalorder %s38, 2
      %s40 = scalar_select %p39, 0, %s38
      %s41 = ssub.s32 %s28, %s40
      %s42 = ssub.s32 %s29, %s36
      %s43 = sor.u32 %s41, %s42
      %p44 = scmp.eq.s32.totalorder %s43, 0
      %s46 = sadd.s32 %s45, 1
      %s47 = scalar_select %p44, %s45, %s46
      %p50 = pneg %p44
      %p51 = scmp.eq.s32.totalorder %s21, 1
      %p52 = por %p50, %p51
      %p53 = scmp.ne.s32.totalorder %s45, %s48
      %p54 = scmp.eq.s32.totalorder %s21, 0
      %p55 = por %p53, %p54
      %p56 = scmp.ne.s32.totalorder %s45, %s48
      %p57 = scmp.eq.s32.totalorder %s26, 1
      %p58 = por %p56, %p57
      %p59 = scmp.ne.s32.totalorder %s48, %s49
      %p60 = scmp.eq.s32.totalorder %s26, 0
      %p61 = por %p59, %p60
      %p62 = scmp.ne.s32.totalorder %s48, %s49
      %p63 = scmp.eq.s32.totalorder %s27, 1
      %p64 = por %p62, %p63
      %p66 = scmp.ne.s32.totalorder %s49, %s65
      %p67 = scmp.eq.s32.totalorder %s27, 0
      %p68 = por %p66, %p67
      %s70 = sadd.s32 %s69, 1
      %p73 = scmp.eq.s32.totalorder %s21, 1
      %p74 = scmp.ne.s32.totalorder %s69, %s71
      %p75 = scmp.eq.s32.totalorder %s21, 0
      %p76 = por %p74, %p75
      %p77 = scmp.ne.s32.totalorder %s69, %s71
      %p78 = scmp.eq.s32.totalorder %s26, 1
      %p79 = por %p77, %p78
      %p80 = scmp.ne.s32.totalorder %s71, %s72
      %p81 = scmp.eq.s32.totalorder %s26, 0
      %p82 = por %p80, %p81
      %p83 = scmp.ne.s32.totalorder %s71, %s72
      %p84 = scmp.eq.s32.totalorder %s27, 1
      %p85 = por %p83, %p84
      %p87 = scmp.ne.s32.totalorder %s72, %s86
      %p88 = scmp.eq.s32.totalorder %s27, 0
      %p89 = por %p87, %p88
      %s91 = sadd.s32 %s90, 1
      %p94 = scmp.eq.s32.totalorder %s21, 1
      %p95 = scmp.ne.s32.totalorder %s90, %s92
      %p96 = scmp.eq.s32.totalorder %s21, 0
      %p97 = por %p95, %p96
      %p98 = scmp.ne.s32.totalorder %s90, %s92
      %p99 = scmp.eq.s32.totalorder %s26, 1
      %p100 = por %p98, %p99
      %p101 = scmp.ne.s32.totalorder %s92, %s93
      %p102 = scmp.eq.s32.totalorder %s26, 0
      %p103 = por %p101, %p102
      %p104 = scmp.ne.s32.totalorder %s92, %s93
      %p105 = scmp.eq.s32.totalorder %s27, 1
      %p106 = por %p104, %p105
      %p108 = scmp.ne.s32.totalorder %s93, %s107
      %p109 = scmp.eq.s32.totalorder %s27, 0
      %p110 = por %p108, %p109
      %s111 = ssub.s32 %s28, %s40
      %p112 = scmp.eq.s32.totalorder %s111, 0
      %s114 = sadd.s32 %s113, 1
      %s115 = scalar_select %p112, %s113, %s114
      %p118 = pneg %p112
      %p119 = scmp.eq.s32.totalorder %s21, 1
      %p120 = por %p118, %p119
      %p121 = scmp.ne.s32.totalorder %s113, %s116
      %p122 = scmp.eq.s32.totalorder %s21, 0
      %p123 = por %p121, %p122
      %p124 = scmp.ne.s32.totalorder %s113, %s116
      %p125 = scmp.eq.s32.totalorder %s26, 1
      %p126 = por %p124, %p125
      %p127 = scmp.ne.s32.totalorder %s116, %s117
      %p128 = scmp.eq.s32.totalorder %s26, 0
      %p129 = por %p127, %p128
      %p130 = scmp.ne.s32.totalorder %s116, %s117
      %p131 = scmp.eq.s32.totalorder %s27, 1
      %p132 = por %p130, %p131
      %p134 = scmp.ne.s32.totalorder %s117, %s133
      %p135 = scmp.eq.s32.totalorder %s27, 0
      %p136 = por %p134, %p135
      %s137 = ssub.s32 %s28, %s40
      %p138 = scmp.eq.s32.totalorder %s137, 0
      %s140 = sadd.s32 %s139, 1
      %s141 = scalar_select %p138, %s139, %s140
      %p144 = pneg %p138
      %p145 = scmp.eq.s32.totalorder %s21, 1
      %p146 = por %p144, %p145
      %p147 = scmp.ne.s32.totalorder %s139, %s142
      %p148 = scmp.eq.s32.totalorder %s21, 0
      %p149 = por %p147, %p148
      %p150 = scmp.ne.s32.totalorder %s139, %s142
      %p151 = scmp.eq.s32.totalorder %s26, 1
      %p152 = por %p150, %p151
      %p153 = scmp.ne.s32.totalorder %s142, %s143
      %p154 = scmp.eq.s32.totalorder %s26, 0
      %p155 = por %p153, %p154
      %p156 = scmp.ne.s32.totalorder %s142, %s143
      %p157 = scmp.eq.s32.totalorder %s27, 1
      %p158 = por %p156, %p157
      %p160 = scmp.ne.s32.totalorder %s143, %s159
      %p161 = scmp.eq.s32.totalorder %s27, 0
      %p162 = por %p160, %p161
      %p163 = scmp.le.s32.totalorder 1, %s21
      %p164 = scmp.lt.s32.totalorder %s21, 3
      %p165 = pnand %p163, %p164
      %p166 = pneg %p165
      // Predicated region
      $region9: #{tpu_custom_call.1} parent=5 // pred_check
        _
      $region10: #{tpu_custom_call.1} parent=5 // pred_check_branch
        %168 = sbr.rel (%p165) target = $region12
      $region11: #{tpu_custom_call.1} parent=5 // pred_region
        %s169 = ssub.s32 %s21, 1
        // Predicated region
        $region13: #{tpu_custom_call.1} parent=11 // pred_check
          %p170 = pneg %p82
        $region14: #{tpu_custom_call.1} parent=11 // pred_check_branch
          %172 = sbr.rel (%p170) target = $region16
        $region15: #{tpu_custom_call.1} parent=11 // pred_region
          %s174 = ssub.s32 256, 256
          %175 = vsyncadd [#allocation6], %s174
          %s176 = sshll.u32 [#allocation5], 4
          %s177 = int_to_ptr.vmem [resolvable:$true] %s176
          %182 = dma.hbm_to_vmem [thread:$0]  %s1, 256, %s177, [#allocation6], 64, 64, 4
        $region16: #{tpu_custom_call.1} parent=11 // pred_fallthru
          _
        // Predicated region
        $region17: #{tpu_custom_call.1} parent=11 // pred_check
          %p183 = pneg %p103
        $region18: #{tpu_custom_call.1} parent=11 // pred_check_branch
          %185 = sbr.rel (%p183) target = $region20
        $region19: #{tpu_custom_call.1} parent=11 // pred_region
          _
        $region20: #{tpu_custom_call.1} parent=11 // pred_fallthru
          _
      $region12: #{tpu_custom_call.1} parent=5 // pred_fallthru
        _
      %p186 = scmp.lt.s32.totalorder %s21, 2
      // Predicated region
      $region21: #{tpu_custom_call.1} parent=5 // pred_check
        %p187 = pneg %p186
      $region22: #{tpu_custom_call.1} parent=5 // pred_check_branch
        %189 = sbr.rel (%p187) target = $region24
      $region23: #{tpu_custom_call.1} parent=5 // pred_region
        // Predicated region
        $region25: #{tpu_custom_call.1} parent=23 // pred_check
          %p190 = pneg %p55
        $region26: #{tpu_custom_call.1} parent=23 // pred_check_branch
          %192 = sbr.rel (%p190) target = $region28
        $region27: #{tpu_custom_call.1} parent=23 // pred_region
          %s193 = sand.u32 %s45, 1
          %s194 = scalar_lea.sflag [#allocation3], %s193
          %s195 = sand.u32 %s45, 1
          %s196 = smul.addr %s195, 8
          %s197 = scalar_lea.vmem [#allocation2], %s196
          %s199 = ssub.s32 128, 128
          %200 = vsyncadd %s194, %s199
          %s201 = sadd.s32 %s29, %s28
          %s202 = smul.addr %s201, 128
          %s203 = scalar_lea.hbm %s0, %s202
          %s205 = sshll.u32 %s197, 4
          %s206 = int_to_ptr.vmem [resolvable:$true] %s205
          %208 = dma.hbm_to_vmem [thread:$0]  %s203, 128, %s206, %s194
        $region28: #{tpu_custom_call.1} parent=23 // pred_fallthru
          _
      $region24: #{tpu_custom_call.1} parent=5 // pred_fallthru
        _
      %p209 = scmp.le.s32.totalorder 1, %s21
      %p210 = scmp.lt.s32.totalorder %s21, 3
      %p211 = pnand %p209, %p210
      %p212 = pneg %p211
      // Predicated region
      $region29: #{tpu_custom_call.1} parent=5 // pred_check
        _
      $region30: #{tpu_custom_call.1} parent=5 // pred_check_branch
        %214 = sbr.rel (%p211) target = $region32
      $region31: #{tpu_custom_call.1} parent=5 // pred_region
        %s215 = ssub.s32 %s21, 1
        %s216 = sand.u32 %s48, 1
        %s217 = scalar_lea.sflag [#allocation3], %s216
        %s218 = sand.u32 %s48, 1
        %s219 = smul.addr %s218, 8
        %s220 = scalar_lea.vmem [#allocation2], %s219
        // Predicated region
        $region33: #{tpu_custom_call.1} parent=31 // pred_check
          %p221 = pneg %p61
        $region34: #{tpu_custom_call.1} parent=31 // pred_check_branch
          %223 = sbr.rel (%p221) target = $region36
        $region35: #{tpu_custom_call.1} parent=31 // pred_region
          %224 = dma.done %s217, 128
        $region36: #{tpu_custom_call.1} parent=31 // pred_fallthru
          _
        // Predicated region
        $region37: #{tpu_custom_call.1} parent=31 // pred_check
          %p225 = pneg %p82
        $region38: #{tpu_custom_call.1} parent=31 // pred_check_branch
          %227 = sbr.rel (%p225) target = $region40
        $region39: #{tpu_custom_call.1} parent=31 // pred_region
          %228 = dma.done [#allocation6], 256
        $region40: #{tpu_custom_call.1} parent=31 // pred_fallthru
          _
        %s229 = sand.u32 %s48, 1
        %s230 = scalar_lea.sflag [#allocation3], %s229
        %s231 = sand.u32 %s48, 1
        %s232 = smul.addr %s231, 8
        %s233 = scalar_lea.vmem [#allocation2], %s232
        %p234 = pneg %p61
        %p235 = pneg %p58
        %p236 = pneg %p82
        %p237 = pneg %p79
        %p238 = pneg %p103
        %p239 = pneg %p100
        %p240 = pneg %p129
        %p241 = pneg %p126
        %s242 = sand.u32 %s116, 1
        %s243 = scalar_lea.sflag [#allocation4], %s242
        %s244 = sand.u32 %s116, 1
        %s245 = smul.addr %s244, 32
        %s246 = scalar_lea.vmem [#allocation7], %s245
        %p247 = pneg %p155
        %p248 = pneg %p152
        %s249 = sand.u32 %s142, 1
        %s250 = scalar_lea.sflag [#allocation9], %s249
        %s251 = sand.u32 %s142, 1
        %s252 = smul.addr %s251, 4
        %s253 = scalar_lea.vmem [#allocation8], %s252
        %p255 = scmp.eq.s32.totalorder %s31, 0
        // Predicated region
        $region41: #{tpu_custom_call.1} parent=31 // pred_check
          %p256 = pneg %p255
        $region42: #{tpu_custom_call.1} parent=31 // pred_check_branch
          %258 = sbr.rel (%p256) target = $region44
        $region43: #{tpu_custom_call.1} parent=31 // pred_region
          %vm259 = vcmask 64512
          %260 = vst.msk [vmem:[%s246] sm:$0xff] %vm259, 0.0
          %261 = vst.msk [vmem:[%s246 + $0x8] sm:$0xff] %vm259, 0.0
          %262 = vst.msk [vmem:[%s246 + $0x10] sm:$0xff] %vm259, 0.0
          %263 = vst.msk [vmem:[%s246 + $0x18] sm:$0xff] %vm259, 0.0
          %vm264 = vcmask 57344
          %265 = vst.msk [vmem:[%s253] sm:$0x1] %vm264, 0.0
          %266 = vst.msk [vmem:[%s253 + $0x1] sm:$0x1] %vm264, 0.0
          %267 = vst.msk [vmem:[%s253 + $0x2] sm:$0x1] %vm264, 0.0
          %268 = vst.msk [vmem:[%s253 + $0x3] sm:$0x1] %vm264, 0.0
        $region44: #{tpu_custom_call.1} parent=31 // pred_fallthru
          _
        %v269 = vld [vmem:[%s220] sm:$0xff]
        %v270 = vpack.c.bf16 %v269, %v269
        %v271 = vld [vmem:[#allocation5] sm:$0xf]
        %v272 = vld [vmem:[#allocation5 + $0x4] sm:$0xf]
        %v273 = vld [vmem:[#allocation5 + $0x8] sm:$0xf]
        %v274 = vld [vmem:[#allocation5 + $0xc] sm:$0xf]
        %v275 = vld [vmem:[%s2] sm:$0x1]
        %v277 = vlaneseq
        %v278 = vshrl.u32 %v277, 7
        %v279 = vsub.s32 0, %v278
        %v280 = vrot.slane %v275, %v279
        %v286 = vunpack.c.l.b16 %v271
        %v287 = vunpack.c.l.b16 %v272
        %v288 = vunpack.c.l.b16 %v273
        %v289 = vunpack.c.l.b16 %v274
        %v290 = vpack.c.b16 %v287, %v286
        %v291 = vpack.c.b16 %v289, %v288
        %vm294 = vcmask 261120
        %v296 = vsel %vm294, %v270, 0
        %298 = vmatprep.subr.bf16.mxu0 0
        %299 = vmatpush1.bf16.msra.mxu0 %v290
        %300 = vmatprep.subr.bf16.mxu0 0
        %301 = vmatpush1.bf16.msra.mxu0 %v291
        %302 = vmatprep.subr.bf16.mxu0 0
        %303 = vmatpush1.bf16.msra.mxu0 0
        %304 = vmatprep.subr.bf16.mxu0 0
        %305 = vmatpush1.bf16.msra.mxu0 0
        %306 = vmatprep.subr.bf16.mxu0 0
        %307 = vmatpush1.bf16.msra.mxu0 0
        %308 = vmatprep.subr.bf16.mxu0 0
        %309 = vmatpush1.bf16.msra.mxu0 0
        %310 = vmatprep.subr.bf16.mxu0 0
        %311 = vmatpush1.bf16.msra.mxu0 0
        %312 = vmatprep.subr.bf16.mxu0 0
        %313 = vmatpush1.bf16.msra.mxu0 0
        %314 = vmatprep.subr.bf16.mxu0 0
        %315 = vmatpush1.bf16.msra.mxu0 0
        %316 = vmatprep.subr.bf16.mxu0 0
        %317 = vmatpush1.bf16.msra.mxu0 0
        %318 = vmatprep.subr.bf16.mxu0 0
        %319 = vmatpush1.bf16.msra.mxu0 0
        %320 = vmatprep.subr.bf16.mxu0 0
        %321 = vmatpush1.bf16.msra.mxu0 0
        %322 = vmatprep.subr.bf16.mxu0 0
        %323 = vmatpush1.bf16.msra.mxu0 0
        %324 = vmatprep.subr.bf16.mxu0 0
        %325 = vmatpush1.bf16.msra.mxu0 0
        %326 = vmatprep.subr.bf16.mxu0 0
        %327 = vmatpush1.bf16.msra.mxu0 0
        %328 = vmatprep.subr.bf16.mxu0 0
        %329 = vmatpush1.bf16.msra.mxu0 0
        %330 = vmatprep.mubr.bf16.mxu0 0
        %331 = vmatmul.mubr.bf16.gmra.mrb[0].mxu0 %v296
        %v332 = vpop.f32.mrb[0].mxu0
        %v333 = vadd.f32 %v280, %v332
        %v334 = vpop.f32.mrb[0].mxu0
        %v335 = vpop.f32.mrb[0].mxu0
        %v336 = vpop.f32.mrb[0].mxu0
        %337 = vdwg.mxu0
        %vm338 = vcmask 64512
        %v339 = vsel %vm338, %v333, -inf
        %340 = vmax.xlane.f32.xlu0 %v339
        %v341 = vpop.xlane.xlu0 %340
        %v342 = vsub.f32 %v333, %v341
        %v343 = vmul.f32 %v342, 1.442695
        %v344 = vpow.pop %v343
        %v345 = vsel %vm338, %v344, 0.0
        %346 = vadd.xlane.f32.xlu0 %v345
        %v347 = vpop.xlane.xlu0 %346
        %v348 = vrcp.pop %v347
        %v349 = vmul.f32 %v344, %v348
        %v350 = vld [vmem:[%s253] sm:$0x1]
        %v351 = vsel %vm338, %v349, 0.0
        %v352 = vrot.slane %v351, 4
        %v353 = vadd.f32 %v351, %v352
        %v354 = vrot.slane %v353, 2
        %v355 = vadd.f32 %v353, %v354
        %v356 = vrot.slane %v355, 1
        %v357 = vadd.f32 %v355, %v356
        %v358 = vadd.f32 %v350, %v357
        %vm359 = vcmask 57344
        %360 = vst.msk [vmem:[%s253] sm:$0x1] %vm359, %v358
        %v361 = vld [vmem:[%s246] sm:$0xff]
        %v362 = vpack.c.bf16 %v349, %v349
        %v363 = vpack.c.bf16 %v333, %v333
        %364 = vxpose.xlu0.c.b16.start [1/8] %v362, 128
        %365 = vxpose.xlu0.c.b16.cont [2/8] 0, 128
        %366 = vxpose.xlu0.c.b16.cont [3/8] 0, 128
        %367 = vxpose.xlu0.c.b16.cont [4/8] 0, 128
        %368 = vxpose.xlu0.c.b16.cont [5/8] 0, 128
        %369 = vxpose.xlu0.c.b16.cont [6/8] 0, 128
        %370 = vxpose.xlu0.c.b16.cont [7/8] 0, 128
        %371 = vxpose.xlu0.c.b16.end [8/8] 0, 128
        %v372 = vpop.trf.xlu0
        %v373 = vpop.trf.xlu0
        %v374 = vpop.trf.xlu0
        %v375 = vpop.trf.xlu0
        %v376 = vpop.trf.xlu0
        %v377 = vpop.trf.xlu0
        %v378 = vpop.trf.xlu0
        %v379 = vpop.trf.xlu0
        %381 = vrot.lane.b32.xlu0 %v363, 96
        %v382 = vpop.permute.xlu0 %381
        %v384 = vsel %vm338, %v372, 0
        %vm386 = vcmask 1043456
        %v388 = vsel %vm386, %v382, 0
        %390 = vmatprep.subr.bf16.mxu0 0
        %391 = vmatpush1.bf16.msra.mxu0 %v388
        %392 = vmatprep.subr.bf16.mxu0 0
        %393 = vmatpush1.bf16.msra.mxu0 0
        %394 = vmatprep.subr.bf16.mxu0 0
        %395 = vmatpush1.bf16.msra.mxu0 0
        %396 = vmatprep.subr.bf16.mxu0 0
        %397 = vmatpush1.bf16.msra.mxu0 0
        %398 = vmatprep.subr.bf16.mxu0 0
        %399 = vmatpush1.bf16.msra.mxu0 0
        %400 = vmatprep.subr.bf16.mxu0 0
        %401 = vmatpush1.bf16.msra.mxu0 0
        %402 = vmatprep.subr.bf16.mxu0 0
        %403 = vmatpush1.bf16.msra.mxu0 0
        %404 = vmatprep.subr.bf16.mxu0 0
        %405 = vmatpush1.bf16.msra.mxu0 0
        %406 = vmatprep.subr.bf16.mxu0 0
        %407 = vmatpush1.bf16.msra.mxu0 0
        %408 = vmatprep.subr.bf16.mxu0 0
        %409 = vmatpush1.bf16.msra.mxu0 0
        %410 = vmatprep.subr.bf16.mxu0 0
        %411 = vmatpush1.bf16.msra.mxu0 0
        %412 = vmatprep.subr.bf16.mxu0 0
        %413 = vmatpush1.bf16.msra.mxu0 0
        %414 = vmatprep.subr.bf16.mxu0 0
        %415 = vmatpush1.bf16.msra.mxu0 0
        %416 = vmatprep.subr.bf16.mxu0 0
        %417 = vmatpush1.bf16.msra.mxu0 0
        %418 = vmatprep.subr.bf16.mxu0 0
        %419 = vmatpush1.bf16.msra.mxu0 0
        %420 = vmatprep.subr.bf16.mxu0 0
        %421 = vmatpush1.bf16.msra.mxu0 0
        %422 = vmatprep.mubr.bf16.mxu0 0
        %423 = vmatmul.mubr.bf16.gmra.mrb[0].mxu0 %v384
        %v424 = vpop.f32.mrb[0].mxu0
        %v425 = vadd.f32 0.0, %v424
        %v426 = vpop.f32.mrb[0].mxu0
        %v427 = vpop.f32.mrb[0].mxu0
        %v428 = vpop.f32.mrb[0].mxu0
        %429 = vdwg.mxu0
        %v430 = vadd.f32 %v361, %v425
        %431 = vst.msk [vmem:[%s246] sm:$0xff] %vm338, %v430
        %vm432 = vcmask 130112
        %v433 = vsel %vm432, %v333, -inf
        %434 = vmax.xlane.f32.xlu0 %v433
        %v435 = vpop.xlane.xlu0 %434
        %v436 = vsub.f32 %v333, %v435
        %v437 = vmul.f32 %v436, 1.442695
        %v438 = vpow.pop %v437
        %440 = vrot.lane.b32.xlu0 %v438, 120
        %v441 = vpop.permute.xlu0 %440
        %v443 = vsel %vm338, %v441, 0.0
        %444 = vadd.xlane.f32.xlu0 %v443
        %v445 = vpop.xlane.xlu0 %444
        %v446 = vrcp.pop %v445
        %v447 = vmul.f32 %v438, %v446
        %s448 = scalar_lea.vmem %s253, 1 [#allocation8]
        %v449 = vld [vmem:[%s448] sm:$0x1]
        %v450 = vsel %vm432, %v447, 0.0
        %v451 = vrot.slane %v450, 4
        %v452 = vadd.f32 %v450, %v451
        %v453 = vrot.slane %v452, 2
        %v454 = vadd.f32 %v452, %v453
        %v455 = vrot.slane %v454, 1
        %v456 = vadd.f32 %v454, %v455
        %v459 = vunpack.c.l.s4 1966171168
        %v460 = vunpack.c.0.s8 %v459
        %v461 = vlaneseq
        %v462 = vshrl.u32 %v461, 7
        %v463 = vsub.s32 %v460, %v462
        %v464 = vrot.slane %v456, %v463
        %v466 = vunpack.c.l.s4 1966171168
        %v467 = vunpack.c.0.s8 %v466
        %v468 = vlaneseq
        %v469 = vshrl.u32 %v468, 7
        %v470 = vsub.s32 %v467, %v469
        %v471 = vrot.slane %v464, %v470
        %472 = vrot.lane.b32.xlu0 %v471, 120
        %v473 = vpop.permute.xlu0 %472
        %v475 = vadd.f32 %v449, %v473
        %476 = vst.msk [vmem:[%s448] sm:$0x1] %vm359, %v475
        %s477 = scalar_lea.vmem %s246, 8 [#allocation7]
        %v478 = vld [vmem:[%s477] sm:$0xff]
        %v479 = vpack.c.bf16 %v447, %v447
        %481 = vrot.lane.b32.xlu0 %v479, 120
        %v482 = vpop.permute.xlu0 %481
        %484 = vxpose.xlu0.c.b16.start [1/8] %v482, 128
        %485 = vxpose.xlu0.c.b16.cont [2/8] 0, 128
        %486 = vxpose.xlu0.c.b16.cont [3/8] 0, 128
        %487 = vxpose.xlu0.c.b16.cont [4/8] 0, 128
        %488 = vxpose.xlu0.c.b16.cont [5/8] 0, 128
        %489 = vxpose.xlu0.c.b16.cont [6/8] 0, 128
        %490 = vxpose.xlu0.c.b16.cont [7/8] 0, 128
        %491 = vxpose.xlu0.c.b16.end [8/8] 0, 128
        %v492 = vpop.trf.xlu0
        %v493 = vpop.trf.xlu0
        %v494 = vpop.trf.xlu0
        %v495 = vpop.trf.xlu0
        %v496 = vpop.trf.xlu0
        %v497 = vpop.trf.xlu0
        %v498 = vpop.trf.xlu0
        %v499 = vpop.trf.xlu0
        %500 = vrot.lane.b32.xlu0 %v363, 88
        %v501 = vpop.permute.xlu0 %500
        %v503 = vsel %vm338, %v492, 0
        %v506 = vsel %vm386, %v501, 0
        %508 = vmatprep.subr.bf16.mxu0 0
        %509 = vmatpush1.bf16.msra.mxu0 %v506
        %510 = vmatprep.subr.bf16.mxu0 0
        %511 = vmatpush1.bf16.msra.mxu0 0
        %512 = vmatprep.subr.bf16.mxu0 0
        %513 = vmatpush1.bf16.msra.mxu0 0
        %514 = vmatprep.subr.bf16.mxu0 0
        %515 = vmatpush1.bf16.msra.mxu0 0
        %516 = vmatprep.subr.bf16.mxu0 0
        %517 = vmatpush1.bf16.msra.mxu0 0
        %518 = vmatprep.subr.bf16.mxu0 0
        %519 = vmatpush1.bf16.msra.mxu0 0
        %520 = vmatprep.subr.bf16.mxu0 0
        %521 = vmatpush1.bf16.msra.mxu0 0
        %522 = vmatprep.subr.bf16.mxu0 0
        %523 = vmatpush1.bf16.msra.mxu0 0
        %524 = vmatprep.subr.bf16.mxu0 0
        %525 = vmatpush1.bf16.msra.mxu0 0
        %526 = vmatprep.subr.bf16.mxu0 0
        %527 = vmatpush1.bf16.msra.mxu0 0
        %528 = vmatprep.subr.bf16.mxu0 0
        %529 = vmatpush1.bf16.msra.mxu0 0
        %530 = vmatprep.subr.bf16.mxu0 0
        %531 = vmatpush1.bf16.msra.mxu0 0
        %532 = vmatprep.subr.bf16.mxu0 0
        %533 = vmatpush1.bf16.msra.mxu0 0
        %534 = vmatprep.subr.bf16.mxu0 0
        %535 = vmatpush1.bf16.msra.mxu0 0
        %536 = vmatprep.subr.bf16.mxu0 0
        %537 = vmatpush1.bf16.msra.mxu0 0
        %538 = vmatprep.subr.bf16.mxu0 0
        %539 = vmatpush1.bf16.msra.mxu0 0
        %540 = vmatprep.mubr.bf16.mxu0 0
        %541 = vmatmul.mubr.bf16.gmra.mrb[0].mxu0 %v503
        %v542 = vpop.f32.mrb[0].mxu0
        %v543 = vadd.f32 0.0, %v542
        %v544 = vpop.f32.mrb[0].mxu0
        %v545 = vpop.f32.mrb[0].mxu0
        %v546 = vpop.f32.mrb[0].mxu0
        %547 = vdwg.mxu0
        %v548 = vadd.f32 %v478, %v543
        %549 = vst.msk [vmem:[%s477] sm:$0xff] %vm338, %v548
        %vm550 = vcmask 195712
        %v551 = vsel %vm550, %v333, -inf
        %552 = vmax.xlane.f32.xlu0 %v551
        %v553 = vpop.xlane.xlu0 %552
        %v554 = vsub.f32 %v333, %v553
        %v555 = vmul.f32 %v554, 1.442695
        %v556 = vpow.pop %v555
        %558 = vrot.lane.b32.xlu0 %v556, 112
        %v559 = vpop.permute.xlu0 %558
        %v561 = vsel %vm338, %v559, 0.0
        %562 = vadd.xlane.f32.xlu0 %v561
        %v563 = vpop.xlane.xlu0 %562
        %v564 = vrcp.pop %v563
        %v565 = vmul.f32 %v556, %v564
        %s566 = scalar_lea.vmem %s253, 2 [#allocation8]
        %v567 = vld [vmem:[%s566] sm:$0x1]
        %v568 = vsel %vm550, %v565, 0.0
        %v569 = vrot.slane %v568, 4
        %v570 = vadd.f32 %v568, %v569
        %v571 = vrot.slane %v570, 2
        %v572 = vadd.f32 %v570, %v571
        %v573 = vrot.slane %v572, 1
        %v574 = vadd.f32 %v572, %v573
        %v577 = vunpack.c.l.s4 1966171168
        %v578 = vunpack.c.0.s8 %v577
        %v579 = vlaneseq
        %v580 = vshrl.u32 %v579, 7
        %v581 = vsub.s32 %v578, %v580
        %v582 = vrot.slane %v574, %v581
        %v584 = vunpack.c.l.s4 1966171168
        %v585 = vunpack.c.0.s8 %v584
        %v586 = vlaneseq
        %v587 = vshrl.u32 %v586, 7
        %v588 = vsub.s32 %v585, %v587
        %v589 = vrot.slane %v582, %v588
        %590 = vrot.lane.b32.xlu0 %v589, 112
        %v591 = vpop.permute.xlu0 %590
        %v593 = vadd.f32 %v567, %v591
        %594 = vst.msk [vmem:[%s566] sm:$0x1] %vm359, %v593
        %s595 = scalar_lea.vmem %s246, 16 [#allocation7]
        %v596 = vld [vmem:[%s595] sm:$0xff]
        %v597 = vpack.c.bf16 %v565, %v565
        %599 = vrot.lane.b32.xlu0 %v597, 112
        %v600 = vpop.permute.xlu0 %599
        %602 = vxpose.xlu0.c.b16.start [1/8] %v600, 128
        %603 = vxpose.xlu0.c.b16.cont [2/8] 0, 128
        %604 = vxpose.xlu0.c.b16.cont [3/8] 0, 128
        %605 = vxpose.xlu0.c.b16.cont [4/8] 0, 128
        %606 = vxpose.xlu0.c.b16.cont [5/8] 0, 128
        %607 = vxpose.xlu0.c.b16.cont [6/8] 0, 128
        %608 = vxpose.xlu0.c.b16.cont [7/8] 0, 128
        %609 = vxpose.xlu0.c.b16.end [8/8] 0, 128
        %v610 = vpop.trf.xlu0
        %v611 = vpop.trf.xlu0
        %v612 = vpop.trf.xlu0
        %v613 = vpop.trf.xlu0
        %v614 = vpop.trf.xlu0
        %v615 = vpop.trf.xlu0
        %v616 = vpop.trf.xlu0
        %v617 = vpop.trf.xlu0
        %618 = vrot.lane.b32.xlu0 %v363, 80
        %v619 = vpop.permute.xlu0 %618
        %v621 = vsel %vm338, %v610, 0
        %v624 = vsel %vm386, %v619, 0
        %626 = vmatprep.subr.bf16.mxu0 0
        %627 = vmatpush1.bf16.msra.mxu0 %v624
        %628 = vmatprep.subr.bf16.mxu0 0
        %629 = vmatpush1.bf16.msra.mxu0 0
        %630 = vmatprep.subr.bf16.mxu0 0
        %631 = vmatpush1.bf16.msra.mxu0 0
        %632 = vmatprep.subr.bf16.mxu0 0
        %633 = vmatpush1.bf16.msra.mxu0 0
        %634 = vmatprep.subr.bf16.mxu0 0
        %635 = vmatpush1.bf16.msra.mxu0 0
        %636 = vmatprep.subr.bf16.mxu0 0
        %637 = vmatpush1.bf16.msra.mxu0 0
        %638 = vmatprep.subr.bf16.mxu0 0
        %639 = vmatpush1.bf16.msra.mxu0 0
        %640 = vmatprep.subr.bf16.mxu0 0
        %641 = vmatpush1.bf16.msra.mxu0 0
        %642 = vmatprep.subr.bf16.mxu0 0
        %643 = vmatpush1.bf16.msra.mxu0 0
        %644 = vmatprep.subr.bf16.mxu0 0
        %645 = vmatpush1.bf16.msra.mxu0 0
        %646 = vmatprep.subr.bf16.mxu0 0
        %647 = vmatpush1.bf16.msra.mxu0 0
        %648 = vmatprep.subr.bf16.mxu0 0
        %649 = vmatpush1.bf16.msra.mxu0 0
        %650 = vmatprep.subr.bf16.mxu0 0
        %651 = vmatpush1.bf16.msra.mxu0 0
        %652 = vmatprep.subr.bf16.mxu0 0
        %653 = vmatpush1.bf16.msra.mxu0 0
        %654 = vmatprep.subr.bf16.mxu0 0
        %655 = vmatpush1.bf16.msra.mxu0 0
        %656 = vmatprep.subr.bf16.mxu0 0
        %657 = vmatpush1.bf16.msra.mxu0 0
        %658 = vmatprep.mubr.bf16.mxu0 0
        %659 = vmatmul.mubr.bf16.gmra.mrb[0].mxu0 %v621
        %v660 = vpop.f32.mrb[0].mxu0
        %v661 = vadd.f32 0.0, %v660
        %v662 = vpop.f32.mrb[0].mxu0
        %v663 = vpop.f32.mrb[0].mxu0
        %v664 = vpop.f32.mrb[0].mxu0
        %665 = vdwg.mxu0
        %v666 = vadd.f32 %v596, %v661
        %667 = vst.msk [vmem:[%s595] sm:$0xff] %vm338, %v666
        %vm668 = vcmask 261312
        %v669 = vsel %vm668, %v333, -inf
        %670 = vmax.xlane.f32.xlu0 %v669
        %v671 = vpop.xlane.xlu0 %670
        %v672 = vsub.f32 %v333, %v671
        %v673 = vmul.f32 %v672, 1.442695
        %v674 = vpow.pop %v673
        %676 = vrot.lane.b32.xlu0 %v674, 104
        %v677 = vpop.permute.xlu0 %676
        %v679 = vsel %vm338, %v677, 0.0
        %680 = vadd.xlane.f32.xlu0 %v679
        %v681 = vpop.xlane.xlu0 %680
        %v682 = vrcp.pop %v681
        %v683 = vmul.f32 %v674, %v682
        %s684 = scalar_lea.vmem %s253, 3 [#allocation8]
        %v685 = vld [vmem:[%s684] sm:$0x1]
        %v686 = vsel %vm668, %v683, 0.0
        %v687 = vrot.slane %v686, 4
        %v688 = vadd.f32 %v686, %v687
        %v689 = vrot.slane %v688, 2
        %v690 = vadd.f32 %v688, %v689
        %v691 = vrot.slane %v690, 1
        %v692 = vadd.f32 %v690, %v691
        %v695 = vunpack.c.l.s4 1966171168
        %v696 = vunpack.c.0.s8 %v695
        %v697 = vlaneseq
        %v698 = vshrl.u32 %v697, 7
        %v699 = vsub.s32 %v696, %v698
        %v700 = vrot.slane %v692, %v699
        %v702 = vunpack.c.l.s4 1966171168
        %v703 = vunpack.c.0.s8 %v702
        %v704 = vlaneseq
        %v705 = vshrl.u32 %v704, 7
        %v706 = vsub.s32 %v703, %v705
        %v707 = vrot.slane %v700, %v706
        %708 = vrot.lane.b32.xlu0 %v707, 104
        %v709 = vpop.permute.xlu0 %708
        %v711 = vadd.f32 %v685, %v709
        %712 = vst.msk [vmem:[%s684] sm:$0x1] %vm359, %v711
        %s713 = scalar_lea.vmem %s246, 24 [#allocation7]
        %v714 = vld [vmem:[%s713] sm:$0xff]
        %v715 = vpack.c.bf16 %v683, %v683
        %717 = vrot.lane.b32.xlu0 %v715, 104
        %v718 = vpop.permute.xlu0 %717
        %720 = vxpose.xlu0.c.b16.start [1/8] %v718, 128
        %721 = vxpose.xlu0.c.b16.cont [2/8] 0, 128
        %722 = vxpose.xlu0.c.b16.cont [3/8] 0, 128
        %723 = vxpose.xlu0.c.b16.cont [4/8] 0, 128
        %724 = vxpose.xlu0.c.b16.cont [5/8] 0, 128
        %725 = vxpose.xlu0.c.b16.cont [6/8] 0, 128
        %726 = vxpose.xlu0.c.b16.cont [7/8] 0, 128
        %727 = vxpose.xlu0.c.b16.end [8/8] 0, 128
        %v728 = vpop.trf.xlu0
        %v729 = vpop.trf.xlu0
        %v730 = vpop.trf.xlu0
        %v731 = vpop.trf.xlu0
        %v732 = vpop.trf.xlu0
        %v733 = vpop.trf.xlu0
        %v734 = vpop.trf.xlu0
        %v735 = vpop.trf.xlu0
        %736 = vrot.lane.b32.xlu0 %v363, 72
        %v737 = vpop.permute.xlu0 %736
        %v739 = vsel %vm338, %v728, 0
        %v742 = vsel %vm386, %v737, 0
        %744 = vmatprep.subr.bf16.mxu0 0
        %745 = vmatpush1.bf16.msra.mxu0 %v742
        %746 = vmatprep.subr.bf16.mxu0 0
        %747 = vmatpush1.bf16.msra.mxu0 0
        %748 = vmatprep.subr.bf16.mxu0 0
        %749 = vmatpush1.bf16.msra.mxu0 0
        %750 = vmatprep.subr.bf16.mxu0 0
        %751 = vmatpush1.bf16.msra.mxu0 0
        %752 = vmatprep.subr.bf16.mxu0 0
        %753 = vmatpush1.bf16.msra.mxu0 0
        %754 = vmatprep.subr.bf16.mxu0 0
        %755 = vmatpush1.bf16.msra.mxu0 0
        %756 = vmatprep.subr.bf16.mxu0 0
        %757 = vmatpush1.bf16.msra.mxu0 0
        %758 = vmatprep.subr.bf16.mxu0 0
        %759 = vmatpush1.bf16.msra.mxu0 0
        %760 = vmatprep.subr.bf16.mxu0 0
        %761 = vmatpush1.bf16.msra.mxu0 0
        %762 = vmatprep.subr.bf16.mxu0 0
        %763 = vmatpush1.bf16.msra.mxu0 0
        %764 = vmatprep.subr.bf16.mxu0 0
        %765 = vmatpush1.bf16.msra.mxu0 0
        %766 = vmatprep.subr.bf16.mxu0 0
        %767 = vmatpush1.bf16.msra.mxu0 0
        %768 = vmatprep.subr.bf16.mxu0 0
        %769 = vmatpush1.bf16.msra.mxu0 0
        %770 = vmatprep.subr.bf16.mxu0 0
        %771 = vmatpush1.bf16.msra.mxu0 0
        %772 = vmatprep.subr.bf16.mxu0 0
        %773 = vmatpush1.bf16.msra.mxu0 0
        %774 = vmatprep.subr.bf16.mxu0 0
        %775 = vmatpush1.bf16.msra.mxu0 0
        %776 = vmatprep.mubr.bf16.mxu0 0
        %777 = vmatmul.mubr.bf16.gmra.mrb[0].mxu0 %v739
        %v778 = vpop.f32.mrb[0].mxu0
        %v779 = vadd.f32 0.0, %v778
        %v780 = vpop.f32.mrb[0].mxu0
        %v781 = vpop.f32.mrb[0].mxu0
        %v782 = vpop.f32.mrb[0].mxu0
        %783 = vdwg.mxu0
        %v784 = vadd.f32 %v714, %v779
        %785 = vst.msk [vmem:[%s713] sm:$0xff] %vm338, %v784
        %s786 = sand.u32 %s116, 1
        %s787 = scalar_lea.sflag [#allocation4], %s786
        %s788 = sand.u32 %s116, 1
        %s789 = smul.addr %s788, 32
        %s790 = scalar_lea.vmem [#allocation7], %s789
        %s791 = sand.u32 %s142, 1
        %s792 = scalar_lea.sflag [#allocation9], %s791
        %s793 = sand.u32 %s142, 1
        %s794 = smul.addr %s793, 4
        %s795 = scalar_lea.vmem [#allocation8], %s794
        // Predicated region
        $region45: #{tpu_custom_call.1} parent=31 // pred_check
          %p796 = pneg %p126
        $region46: #{tpu_custom_call.1} parent=31 // pred_check_branch
          %798 = sbr.rel (%p796) target = $region48
        $region47: #{tpu_custom_call.1} parent=31 // pred_region
          %s800 = ssub.s32 512, 512
          %801 = vsyncadd %s787, %s800
          %s802 = smul.addr %s30, 4
          %s803 = smul.addr %s802, 128
          %s804 = scalar_lea.hbm %s3, %s803
          %s805 = sshll.u32 %s790, 4
          %s806 = int_to_ptr.vmem [resolvable:$true] %s805
          %811 = dma.vmem_to_hbm [thread:$0]  %s806, 512, %s804, %s787, 128, 128, 8
        $region48: #{tpu_custom_call.1} parent=31 // pred_fallthru
          _
        // Predicated region
        $region49: #{tpu_custom_call.1} parent=31 // pred_check
          %p812 = pneg %p152
        $region50: #{tpu_custom_call.1} parent=31 // pred_check_branch
          %814 = sbr.rel (%p812) target = $region52
        $region51: #{tpu_custom_call.1} parent=31 // pred_region
          %s816 = ssub.s32 64, 64
          %817 = vsyncadd %s792, %s816
          %s818 = smul.addr %s30, 4
          %s819 = smul.addr %s818, 16
          %s820 = scalar_lea.hbm %s4, %s819
          %s821 = sshll.u32 %s795, 4
          %s822 = int_to_ptr.vmem [resolvable:$true] %s821
          %827 = dma.vmem_to_hbm [thread:$0]  %s822, 64, %s820, %s792, 16, 16, 1
        $region52: #{tpu_custom_call.1} parent=31 // pred_fallthru
          _
      $region32: #{tpu_custom_call.1} parent=5 // pred_fallthru
        _
      %p828 = scmp.le.s32.totalorder 2, %s21
      // Predicated region
      $region53: #{tpu_custom_call.1} parent=5 // pred_check
        %p829 = pneg %p828
      $region54: #{tpu_custom_call.1} parent=5 // pred_check_branch
        %831 = sbr.rel (%p829) target = $region56
      $region55: #{tpu_custom_call.1} parent=5 // pred_region
        %s832 = ssub.s32 %s21, 2
        // Predicated region
        $region57: #{tpu_custom_call.1} parent=55 // pred_check
          %p833 = pneg %p132
        $region58: #{tpu_custom_call.1} parent=55 // pred_check_branch
          %835 = sbr.rel (%p833) target = $region60
        $region59: #{tpu_custom_call.1} parent=55 // pred_region
          %s836 = sand.u32 %s117, 1
          %s837 = scalar_lea.sflag [#allocation4], %s836
          %s838 = sand.u32 %s117, 1
          %s839 = smul.addr %s838, 32
          %s840 = scalar_lea.vmem [#allocation7], %s839
          %841 = dma.done %s837, 512
        $region60: #{tpu_custom_call.1} parent=55 // pred_fallthru
          _
        // Predicated region
        $region61: #{tpu_custom_call.1} parent=55 // pred_check
          %p842 = pneg %p158
        $region62: #{tpu_custom_call.1} parent=55 // pred_check_branch
          %844 = sbr.rel (%p842) target = $region64
        $region63: #{tpu_custom_call.1} parent=55 // pred_region
          %s845 = sand.u32 %s143, 1
          %s846 = scalar_lea.sflag [#allocation9], %s845
          %s847 = sand.u32 %s143, 1
          %s848 = smul.addr %s847, 4
          %s849 = scalar_lea.vmem [#allocation8], %s848
          %850 = dma.done %s846, 64
        $region64: #{tpu_custom_call.1} parent=55 // pred_fallthru
          _
      $region56: #{tpu_custom_call.1} parent=5 // pred_fallthru
        _
    $region6: #{tpu_custom_call.1} parent=1 // loop_footer
      %s25 = sadd.s32 1, %s21
    $region7: #{tpu_custom_call.1} parent=1 // loop_footer_branch
      %20 = sbr.rel target = $region3
    $region8: #{tpu_custom_call.1} parent=1 // loop_exit
      _
    %851 = vsyncpa [#allocation3], 1
    %s852 = scalar_lea.sflag [#allocation3], 1
    %853 = vsyncpa %s852, 1
    %854 = vsyncpa [#allocation6], 1
    %855 = vsyncpa [#allocation4], 1
    %s856 = scalar_lea.sflag [#allocation4], 1
    %857 = vsyncpa %s856, 1
    %858 = vsyncpa [#allocation9], 1
    %s859 = scalar_lea.sflag [#allocation9], 1
    %860 = vsyncpa %s859, 1

</llo_original>
